<compile_context>
chip_gen: v7x
topology: tpu7x:2x2x1
jax: 0.10.0
libtpu: 0.0.40
codegen_flags: <defaults>
</compile_context>

<pallas_src>
import jax
import jax.numpy as jnp
from jax.experimental import pallas as pl
from jax.experimental.pallas import tpu as pltpu


_LANE = 128
_DEFAULT_TILE = 1024  # per review: 4x fewer grid steps vs 512; ~6 MiB temporaries max


def _round_up(x, m):
    return ((x + m - 1) // m) * m


def _exp_dtype():
    """bf16 exp on chips with a bf16 EUP (v6e / v7x); f32 elsewhere (v5e/v5p/...)."""
    try:
        kind = jax.devices()[0].device_kind.lower()
    except Exception:
        kind = ""
    if "v5" in kind or "v4" in kind or "v3" in kind:
        return jnp.float32
    return jnp.bfloat16


def _make_crf_tile_kernel(tile, n_strips, pairs_per_split, exp_dtype):
    """Build the (TILE x TILE) tile-pair kernel.

    Grid: (n_splits, B, pairs_per_split); pair p of split s covers the tile pair
    (i_tbl[f], j_tbl[f]) with f = s * pairs_per_split + p, weighted by w_tbl[f]
    (0 = padding, 1 = diagonal tile, 2 = off-diagonal tile of the upper triangle).

    lhs_ref : (1, C+2, TILE)  augmented i-tile  [2/(2s^2)*I ; -|I|^2/(2s^2) ; 1]
    rhs_ref : (1, C+2, TILE)  augmented j-tile  [I ; 1 ; -|I|^2/(2s^2)]
    segi_ref: (1, K, TILE)    class probabilities, i-tile (bf16, lane-dense)
    segj_ref: (1, K, TILE)    class probabilities, j-tile (bf16, lane-dense)
    out_ref : (1, 1, 8, 128)  per-(split, batch) energy accumulator
    """
    strip = tile // n_strips

    def kernel(i_tbl_ref, j_tbl_ref, w_tbl_ref,
               lhs_ref, rhs_ref, segi_ref, segj_ref, out_ref):
        s = pl.program_id(0)
        p = pl.program_id(2)

        @pl.when(p == 0)
        def _():
            out_ref[...] = jnp.zeros_like(out_ref)

        flat = s * pairs_per_split + p
        scale = w_tbl_ref[flat].astype(jnp.float32)   # 0 (pad) / 1 (diag) / 2 (off-diag)

        lhs_i = lhs_ref[0]                            # (C+2, TILE)  f32, channel-major
        rhs_j = rhs_ref[0]                            # (C+2, TILE)  f32, channel-major
        seg_i = segi_ref[0]                           # (K, TILE)    bf16
        seg_j = segj_ref[0]                           # (K, TILE)    bf16

        energy = jnp.zeros((), jnp.float32)
        # Strip-mine the j-axis: smaller live (TILE, strip) temporaries and the LLO
        # scheduler can overlap MXU result-pop (strip t+1) with EUP exp (strip t).
        for t in range(n_strips):                     # static unroll
            lo = t * strip
            rhs_s = rhs_j[:, lo:lo + strip]           # (C+2, strip)

            # logw[m,n] = -||I_i(m) - I_j(n)||^2 / (2 sigma^2), via one small-K
            # lhsT-style MXU matmul (scale + squared norms folded on the host).
            logw = jax.lax.dot_general(
                lhs_i, rhs_s, (((0,), (0,)), ((), ())),
                preferred_element_type=jnp.float32)   # (TILE, strip) f32

            aff = jnp.exp(logw.astype(exp_dtype))     # bf16 EUP on v6e/v7x, f32 on v5*

            # Fused Gram contraction: sum_{k,m,n} S_i[k,m] W[m,n] S_j[k,n]
            # (no (TILE,TILE) Gram temporary), f32 accumulation.
            tmp = jax.lax.dot_general(
                seg_i, aff.astype(jnp.bfloat16),
                (((1,), (0,)), ((), ())),
                preferred_element_type=jnp.float32)   # (K, strip) f32

            seg_js = seg_j[:, lo:lo + strip].astype(jnp.float32)
            energy = energy + jnp.sum(tmp * seg_js)

        out_ref[...] = out_ref[...] + scale * energy

    return kernel


def color_dense_crf_loss(images, segmentations, *, weight, sigma_rgb, scale_factor):
    """ColorDenseCRFLoss(weight, sigma_rgb, scale_factor)(images, segmentations)."""
    assert scale_factor == 0.5, "only the module default scale_factor=0.5 is implemented"
    B, C, H, W = images.shape
    _, K, _, _ = segmentations.shape
    assert H % 2 == 0 and W % 2 == 0

    # F.interpolate(images, scale_factor=0.5)  -> default mode='nearest'
    imgs_s = images[:, :, ::2, ::2]
    # F.interpolate(segs, scale_factor=0.5, mode='bilinear', align_corners=False)
    # == mean of each 2x2 block for an exact 2x downscale.
    segs_s = segmentations.reshape(B, K, H // 2, 2, W // 2, 2).mean(axis=(3, 5))

    Hs, Ws = H // 2, W // 2
    P = Hs * Ws

    # Lane-dense layout: channels on sublanes, pixels on lanes.
    img = imgs_s.reshape(B, C, P).astype(jnp.float32)          # (B, C, P)
    seg = segs_s.reshape(B, K, P).astype(jnp.bfloat16)         # (B, K, P), probs in [0,1]

    # Mean-center per batch & channel (shift-invariant for ||I_i - I_j||^2) so the
    # cancelling terms in the augmented matmul / exp argument stay small.
    img = img - jnp.mean(img, axis=2, keepdims=True)

    inv2s2 = 1.0 / (2.0 * float(sigma_rgb) ** 2)
    sq = jnp.sum(img * img, axis=1, keepdims=True)             # (B, 1, P)
    ones = jnp.ones_like(sq)
    # Augmented channel-major operands so that  lhs_tile^T @ rhs_tile ==
    #   sum_c 2*inv2s2*I_i[c]*I_j[c] - inv2s2*|I_i|^2 - inv2s2*|I_j|^2
    #   == -||I_i - I_j||^2 / (2 s^2).   (no host-side transpose needed)
    lhs = jnp.concatenate([(2.0 * inv2s2) * img, -inv2s2 * sq, ones], axis=1)  # (B, C+2, P)
    rhs = jnp.concatenate([img, ones, -inv2s2 * sq], axis=1)                   # (B, C+2, P)

    # Tile the pixel axis; pad with ZERO segmentation so padded pixels contribute 0
    # (padded affinities are exp(0)=1 but multiply a zero probability).
    tile = _DEFAULT_TILE
    p_pad = _round_up(P, _LANE)
    if p_pad <= tile:
        tile = p_pad
    else:
        p_pad = _round_up(P, tile)
    if p_pad != P:
        pad = p_pad - P
        lhs = jnp.pad(lhs, ((0, 0), (0, 0), (0, pad)))
        rhs = jnp.pad(rhs, ((0, 0), (0, 0), (0, pad)))
        seg = jnp.pad(seg, ((0, 0), (0, 0), (0, pad)))

    n_tiles = p_pad // tile
    # Upper-triangular tile-pair enumeration (W and the Gram are symmetric).
    pairs = [(i, j) for i in range(n_tiles) for j in range(i, n_tiles)]
    n_pairs = len(pairs)

    # Split the pair table across a leading "parallel" grid axis so a v7x megacore can
    # shard over it even when B is small/odd (no effect on single-TC v5e/v6e).
    n_splits = 2 if n_pairs >= 2 else 1
    pps = _round_up(n_pairs, n_splits) // n_splits
    i_lst, j_lst, w_lst = [], [], []
    for sidx in range(n_splits):
        chunk = pairs[sidx * pps:(sidx + 1) * pps]
        for (i, j) in chunk:
            i_lst.append(i)
            j_lst.append(j)
            w_lst.append(1 if i == j else 2)
        for _ in range(pps - len(chunk)):            # zero-weight dummy pairs
            i_lst.append(0)
            j_lst.append(0)
            w_lst.append(0)
    i_tbl = jnp.asarray(i_lst, dtype=jnp.int32)
    j_tbl = jnp.asarray(j_lst, dtype=jnp.int32)
    w_tbl = jnp.asarray(w_lst, dtype=jnp.int32)

    c2 = C + 2
    # Strip width must stay a multiple of 128 lanes.
    blocks128 = tile // _LANE
    if tile >= 512 and blocks128 % 4 == 0:
        n_strips = 4
    elif tile >= 256 and blocks128 % 2 == 0:
        n_strips = 2
    else:
        n_strips = 1

    kernel = _make_crf_tile_kernel(tile, n_strips, pps, _exp_dtype())

    def lhs_map(s, b, p, it, jt, wt):
        return (b, 0, it[s * pps + p])

    def rhs_map(s, b, p, it, jt, wt):
        return (b, 0, jt[s * pps + p])

    def segi_map(s, b, p, it, jt, wt):
        return (b, 0, it[s * pps + p])

    def segj_map(s, b, p, it, jt, wt):
        return (b, 0, jt[s * pps + p])

    def out_map(s, b, p, it, jt, wt):
        return (s, b, 0, 0)

    energy = pl.pallas_call(
        kernel,
        out_shape=jax.ShapeDtypeStruct((n_splits, B, 8, _LANE), jnp.float32),
        grid_spec=pltpu.PrefetchScalarGridSpec(
            num_scalar_prefetch=3,
            grid=(n_splits, B, pps),
            in_specs=[
                pl.BlockSpec((1, c2, tile), lhs_map),
                pl.BlockSpec((1, c2, tile), rhs_map),
                pl.BlockSpec((1, K, tile), segi_map),
                pl.BlockSpec((1, K, tile), segj_map),
            ],
            out_specs=pl.BlockSpec((1, 1, 8, _LANE), out_map),
        ),
        compiler_params=pltpu.CompilerParams(
            dimension_semantics=("parallel", "parallel", "arbitrary"),
            vmem_limit_bytes=32 * 1024 * 1024,
        ),
    )(i_tbl, j_tbl, w_tbl, lhs, rhs, seg, seg)

    per_batch = jnp.sum(energy[:, :, 0, 0], axis=0)            # (B,)
    # loss = weight * (-1/B) * sum_b energy_b   (shape (1,) like torch.tensor([x]))
    return ((-float(weight) / B) * jnp.sum(per_batch)).reshape(1)


def joint_con_ran_field_negev_forward(raw_img, fcams, glabel=None, *,
                                      lambda_=1.0, sigma_rgb=15.0, scale_factor=0.5):
    """Forward pass (epoch gating defaults to 'on', as with start/end_epoch=None)."""
    # fcams -> per-pixel class probabilities
    if fcams.shape[1] > 1:
        fcams_n = jax.nn.softmax(fcams, axis=1)
    else:
        p = jax.nn.sigmoid(fcams)
        fcams_n = jnp.concatenate([1.0 - p, p], axis=1)

    # TODO(synk): the reference also computes rgb_to_grayscale + pair_samples
    # (torch.randperm), but that result never reaches the returned loss; skipped.
    # TODO(synk): SpgLoss.forward proper calls get_spg_loss(model.logits_dict, ...),
    # which is not defined in the provided spec; the previously-reviewed NEGEV dense
    # color-CRF forward semantics are kept instead.

    return color_dense_crf_loss(raw_img, fcams_n, weight=lambda_,
                                sigma_rgb=sigma_rgb, scale_factor=scale_factor)


if __name__ == "__main__":
    key = jax.random.PRNGKey(0)
    k1, k2, k3 = jax.random.split(key, 3)

    B, H, W = 2, 16, 16
    raw_img = jax.random.uniform(k1, (B, 3, H, W), jnp.float32, 0.0, 255.0)  # RGB in [0,255]
    fcams = jax.random.normal(k2, (B, 2, H, W), jnp.float32)                 # 2-class logits
    glabel = jax.random.randint(k3, (B,), 0, 2)

    loss = joint_con_ran_field_negev_forward(raw_img, fcams, glabel,
                                             lambda_=1.0, sigma_rgb=15.0,
                                             scale_factor=0.5)
    loss = jax.block_until_ready(loss)
    assert loss.shape == (1,) and loss.dtype == jnp.float32
    assert bool(jnp.isfinite(loss).all())
    print("KERNEL_OK")
</pallas_src>

<mosaic_0001>
module attributes {stable_mosaic.version = 11 : i64} {
  func.func @kernel(%arg0: i32, %arg1: i32, %arg2: i32, %arg3: memref<1xi32, #tpu.memory_space<smem>>, %arg4: memref<1xi32, #tpu.memory_space<smem>>, %arg5: memref<1xi32, #tpu.memory_space<smem>>, %arg6: memref<1x5x128xf32, #tpu.memory_space<vmem>>, %arg7: memref<1x5x128xf32, #tpu.memory_space<vmem>>, %arg8: memref<1x2x128xbf16, #tpu.memory_space<vmem>>, %arg9: memref<1x2x128xbf16, #tpu.memory_space<vmem>>, %arg10: memref<1x1x8x128xf32, #tpu.memory_space<vmem>>) attributes {dimension_semantics = [#tpu.dimension_semantics<parallel>, #tpu.dimension_semantics<parallel>, #tpu.dimension_semantics<arbitrary>], iteration_bounds = array<i64: 1, 2, 1>, scalar_prefetch = 3 : i64, scratch_operands = 0 : i64, tpu.core_type = #tpu.core_type<tc>, window_params = [{transform_indices = @transform_0, window_bounds = array<i64: 1, 5, 128>}, {transform_indices = @transform_1, window_bounds = array<i64: 1, 5, 128>}, {transform_indices = @transform_2, window_bounds = array<i64: 1, 2, 128>}, {transform_indices = @transform_3, window_bounds = array<i64: 1, 2, 128>}, {transform_indices = @transform_4, window_bounds = array<i64: 1, 1, 8, 128>}]} {
    %c0_i32 = arith.constant 0 : i32
    %0 = arith.cmpi eq, %arg2, %c0_i32 : i32
    %1 = arith.extui %0 : i1 to i32
    %c0_i32_0 = arith.constant 0 : i32
    %2 = arith.cmpi ne, %1, %c0_i32_0 : i32
    scf.if %2 {
      %cst_23 = arith.constant 0.000000e+00 : f32
      %32 = vector.broadcast %cst_23 : f32 to vector<1x1x8x128xf32>
      %c0_24 = arith.constant 0 : index
      %c0_25 = arith.constant 0 : index
      %c0_26 = arith.constant 0 : index
      %c0_27 = arith.constant 0 : index
      %33 = vector.load %arg10[%c0_24, %c0_25, %c0_26, %c0_27] : memref<1x1x8x128xf32, #tpu.memory_space<vmem>>, vector<1x1x8x128xf32>
      tpu.vector_store %arg10[%c0_24, %c0_25, %c0_26, %c0_27], %32 {strides = array<i32>} : memref<1x1x8x128xf32, #tpu.memory_space<vmem>>, vector<1x1x8x128xf32>,
    } else {
    }
    %c1_i32 = arith.constant 1 : i32
    %3 = arith.muli %arg0, %c1_i32 : i32
    %4 = arith.addi %3, %arg2 : i32
    %5 = arith.index_cast %4 : i32 to index
    %6 = memref.load %arg5[%5] : memref<1xi32, #tpu.memory_space<smem>>
    %7 = arith.sitofp %6 : i32 to f32
    %c0 = arith.constant 0 : index
    %c0_1 = arith.constant 0 : index
    %c0_2 = arith.constant 0 : index
    %8 = vector.load %arg6[%c0, %c0_1, %c0_2] : memref<1x5x128xf32, #tpu.memory_space<vmem>>, vector<1x5x128xf32>
    %9 = vector.shape_cast %8 : vector<1x5x128xf32> to vector<5x128xf32>
    %c0_3 = arith.constant 0 : index
    %c0_4 = arith.constant 0 : index
    %c0_5 = arith.constant 0 : index
    %10 = vector.load %arg7[%c0_3, %c0_4, %c0_5] : memref<1x5x128xf32, #tpu.memory_space<vmem>>, vector<1x5x128xf32>
    %11 = vector.shape_cast %10 : vector<1x5x128xf32> to vector<5x128xf32>
    %c0_6 = arith.constant 0 : index
    %c0_7 = arith.constant 0 : index
    %c0_8 = arith.constant 0 : index
    %12 = vector.load %arg8[%c0_6, %c0_7, %c0_8] : memref<1x2x128xbf16, #tpu.memory_space<vmem>>, vector<1x2x128xbf16>
    %13 = vector.shape_cast %12 : vector<1x2x128xbf16> to vector<2x128xbf16>
    %c0_9 = arith.constant 0 : index
    %c0_10 = arith.constant 0 : index
    %c0_11 = arith.constant 0 : index
    %14 = vector.load %arg9[%c0_9, %c0_10, %c0_11] : memref<1x2x128xbf16, #tpu.memory_space<vmem>>, vector<1x2x128xbf16>
    %15 = vector.shape_cast %14 : vector<1x2x128xbf16> to vector<2x128xbf16>
    %cst = arith.constant dense<0.000000e+00> : vector<128x128xf32>
    %16 = tpu.matmul %9, %11, %cst {dimension_numbers = #tpu.dot_dimension_numbers<[0], [0], [1], [1], [0, 1, 1, 1], [], []>} : vector<5x128xf32>, vector<5x128xf32>, vector<128x128xf32> -> vector<128x128xf32>
    %17 = arith.truncf %16 : vector<128x128xf32> to vector<128x128xbf16>
    %18 = math.exp %17 : vector<128x128xbf16>
    %cst_12 = arith.constant dense<0.000000e+00> : vector<2x128xf32>
    %19 = tpu.matmul %13, %18, %cst_12 {dimension_numbers = #tpu.dot_dimension_numbers<[1], [0], [0], [1], [0, 0, 1, 1], [], []>} : vector<2x128xbf16>, vector<128x128xbf16>, vector<2x128xf32> -> vector<2x128xf32>
    %20 = arith.extf %15 : vector<2x128xbf16> to vector<2x128xf32>
    %21 = arith.mulf %19, %20 : vector<2x128xf32>
    %22 = vector.shape_cast %21 : vector<2x128xf32> to vector<1x2x128xf32>
    %cst_13 = arith.constant dense<0.000000e+00> : vector<1xf32>
    %23 = vector.multi_reduction <add>, %22, %cst_13 [1, 2] : vector<1x2x128xf32> to vector<1xf32>
    %24 = vector.shape_cast %23 : vector<1xf32> to vector<1x1x1xf32>
    %25 = vector.extract %24[0, 0, 0] : f32 from vector<1x1x1xf32>
    %cst_14 = arith.constant 0.000000e+00 : f32
    %26 = arith.addf %cst_14, %25 : f32
    %c0_15 = arith.constant 0 : index
    %c0_16 = arith.constant 0 : index
    %c0_17 = arith.constant 0 : index
    %c0_18 = arith.constant 0 : index
    %27 = vector.load %arg10[%c0_15, %c0_16, %c0_17, %c0_18] : memref<1x1x8x128xf32, #tpu.memory_space<vmem>>, vector<1x1x8x128xf32>
    %28 = arith.mulf %7, %26 : f32
    %29 = vector.broadcast %28 : f32 to vector<1x1x8x128xf32>
    %30 = arith.addf %27, %29 : vector<1x1x8x128xf32>
    %c0_19 = arith.constant 0 : index
    %c0_20 = arith.constant 0 : index
    %c0_21 = arith.constant 0 : index
    %c0_22 = arith.constant 0 : index
    %31 = vector.load %arg10[%c0_19, %c0_20, %c0_21, %c0_22] : memref<1x1x8x128xf32, #tpu.memory_space<vmem>>, vector<1x1x8x128xf32>
    tpu.vector_store %arg10[%c0_19, %c0_20, %c0_21, %c0_22], %30 {strides = array<i32>} : memref<1x1x8x128xf32, #tpu.memory_space<vmem>>, vector<1x1x8x128xf32>,
    return
  }
  func.func @transform_0(%arg0: i32, %arg1: i32, %arg2: i32, %arg3: memref<1xi32, #tpu.memory_space<smem>>, %arg4: memref<1xi32, #tpu.memory_space<smem>>, %arg5: memref<1xi32, #tpu.memory_space<smem>>) -> (i32, i32, i32) {
    %c1_i32 = arith.constant 1 : i32
    %0 = arith.muli %arg0, %c1_i32 : i32
    %1 = arith.addi %0, %arg2 : i32
    %2 = arith.index_cast %1 : i32 to index
    %3 = memref.load %arg3[%2] : memref<1xi32, #tpu.memory_space<smem>>
    %c0_i32 = arith.constant 0 : i32
    %c0_i32_0 = arith.constant 0 : i32
    return %arg1, %c0_i32, %3 : i32, i32, i32
  }
  func.func @transform_1(%arg0: i32, %arg1: i32, %arg2: i32, %arg3: memref<1xi32, #tpu.memory_space<smem>>, %arg4: memref<1xi32, #tpu.memory_space<smem>>, %arg5: memref<1xi32, #tpu.memory_space<smem>>) -> (i32, i32, i32) {
    %c1_i32 = arith.constant 1 : i32
    %0 = arith.muli %arg0, %c1_i32 : i32
    %1 = arith.addi %0, %arg2 : i32
    %2 = arith.index_cast %1 : i32 to index
    %3 = memref.load %arg4[%2] : memref<1xi32, #tpu.memory_space<smem>>
    %c0_i32 = arith.constant 0 : i32
    %c0_i32_0 = arith.constant 0 : i32
    return %arg1, %c0_i32, %3 : i32, i32, i32
  }
  func.func @transform_2(%arg0: i32, %arg1: i32, %arg2: i32, %arg3: memref<1xi32, #tpu.memory_space<smem>>, %arg4: memref<1xi32, #tpu.memory_space<smem>>, %arg5: memref<1xi32, #tpu.memory_space<smem>>) -> (i32, i32, i32) {
    %c1_i32 = arith.constant 1 : i32
    %0 = arith.muli %arg0, %c1_i32 : i32
    %1 = arith.addi %0, %arg2 : i32
    %2 = arith.index_cast %1 : i32 to index
    %3 = memref.load %arg3[%2] : memref<1xi32, #tpu.memory_space<smem>>
    %c0_i32 = arith.constant 0 : i32
    %c0_i32_0 = arith.constant 0 : i32
    return %arg1, %c0_i32, %3 : i32, i32, i32
  }
  func.func @transform_3(%arg0: i32, %arg1: i32, %arg2: i32, %arg3: memref<1xi32, #tpu.memory_space<smem>>, %arg4: memref<1xi32, #tpu.memory_space<smem>>, %arg5: memref<1xi32, #tpu.memory_space<smem>>) -> (i32, i32, i32) {
    %c1_i32 = arith.constant 1 : i32
    %0 = arith.muli %arg0, %c1_i32 : i32
    %1 = arith.addi %0, %arg2 : i32
    %2 = arith.index_cast %1 : i32 to index
    %3 = memref.load %arg4[%2] : memref<1xi32, #tpu.memory_space<smem>>
    %c0_i32 = arith.constant 0 : i32
    %c0_i32_0 = arith.constant 0 : i32
    return %arg1, %c0_i32, %3 : i32, i32, i32
  }
  func.func @transform_4(%arg0: i32, %arg1: i32, %arg2: i32, %arg3: memref<1xi32, #tpu.memory_space<smem>>, %arg4: memref<1xi32, #tpu.memory_space<smem>>, %arg5: memref<1xi32, #tpu.memory_space<smem>>) -> (i32, i32, i32, i32) {
    %c0_i32 = arith.constant 0 : i32
    %c0_i32_0 = arith.constant 0 : i32
    %c0_i32_1 = arith.constant 0 : i32
    return %arg0, %arg1, %c0_i32, %c0_i32_0 : i32, i32, i32, i32
  }
}

</mosaic_0001>

<llo_original>
// kernel: tpu_custom_call.1
$region0: #{tpu_custom_call.1}
  #allocation0 [shape = 'u32[]', space=smem, size = 0x4, offset = 0x4, fixed_abs, tag = 'smem constant byte address 0x4 - core index']
  #allocation1 [shape = 'u32[144,128]{1,0:T(1,128)}', space=vmem, size = 0x12000, scoped, tag = 'internal scratch']
  #allocation2 [shape = 's32[1]{0}', space=sflag, size = 0x4, scoped, tag = 'scoped memory for tpu_custom_call.1']
  #allocation3 [shape = 's32[1]{0:T(128)S(6)}', space=smem, size = 0x200, scoped, tag = 'prefetched SMEM operand 0']
  #allocation4 [shape = 's32[1]{0:T(128)S(6)}', space=smem, size = 0x200, scoped, tag = 'prefetched SMEM operand 1']
  #allocation5 [shape = 's32[1]{0:T(128)S(6)}', space=smem, size = 0x200, scoped, tag = 'prefetched SMEM operand 2']
  %s0 = inlined_call_operand.<no memory space> [shape: s32[1], index: 0, kind: input, shape index: {}]
  %s1 = inlined_call_operand.<no memory space> [shape: s32[1], index: 1, kind: input, shape index: {}]
  %s2 = inlined_call_operand.<no memory space> [shape: s32[1], index: 2, kind: input, shape index: {}]
  %s3 = inlined_call_operand.vmem [shape: f32[2,5,128], index: 3, kind: input, shape index: {}]
  %s4 = inlined_call_operand.vmem [shape: f32[2,5,128], index: 4, kind: input, shape index: {}]
  %s5 = inlined_call_operand.vmem [shape: bf16[2,2,128], index: 5, kind: input, shape index: {}]
  %s6 = inlined_call_operand.vmem [shape: bf16[2,2,128], index: 6, kind: input, shape index: {}]
  %s7 = inlined_call_operand.hbm [shape: f32[1,2,8,128], index: 7, kind: output, shape index: {}]
  %s8 = sld [smem:[#allocation0]]
  $region53: #{tpu_custom_call.1} parent=0
    _
  %s10 = ssub.s32 1, %s8
  %s11 = scalar_select 0, %s10, %s8
  %12 = sst [smem:[#allocation3]] %s0
  %13 = sst [smem:[#allocation4]] %s1
  %14 = sst [smem:[#allocation5]] %s2
  $region1: #{tpu_custom_call.1} parent=0
    #allocation6 [shape = 'u8[8192]{0}', space=vmem, size = 0x2000, scoped, tag = 'output window, operand 0']
    #allocation7 [shape = 's32[2]{0}', space=sflag, size = 0x8, scoped, tag = 'scoped memory for tpu_custom_call.1']
    %15 = vsyncpa [#allocation7], 0
    %s16 = scalar_lea.sflag [#allocation7], 1
    %17 = vsyncpa %s16, 0
    loop: start=0, step=1, limit=4
    $region2: #{tpu_custom_call.1} parent=1 // loop_pre_header
      _
    $region3: #{tpu_custom_call.1} parent=1 // loop_header
      %s19 = sphi 0, %s23
      %p20 = scmp.ge.s32.totalorder %s19, 4
      %s26 = sphi 0, %s45
      %s27 = sphi 0, %s41
      %s28 = sphi 0, %s37
      %s29 = sphi 0, %s26
      %s30 = sphi 0, %s27
      %s31 = sphi 0, %s28
      %s32 = sphi 0, %s29
      %s33 = sphi 0, %s30
      %s34 = sphi 0, %s31
      %s54 = sphi 0, %s56
      %s57 = sphi 0, %s54
      %s58 = sphi 0, %s57
      %s74 = sphi 0, %s58
      %s86 = sphi 0, %s88
      %s89 = sphi 0, %s86
      %s90 = sphi 0, %s89
      %s106 = sphi 0, %s90
      %s118 = sphi 0, %s120
      %s121 = sphi 0, %s118
      %s122 = sphi 0, %s121
      %s138 = sphi 0, %s122
      %s150 = sphi 0, %s152
      %s153 = sphi 0, %s150
      %s154 = sphi 0, %s153
      %s170 = sphi 0, %s154
      %s178 = sphi 0, %s180
      %s181 = sphi 0, %s178
      %s182 = sphi 0, %s181
      %s198 = sphi 0, %s182
    $region4: #{tpu_custom_call.1} parent=1 // loop_header_branch
      %22 = sbr.rel (%p20) target = $region8
    $region5: #{tpu_custom_call.1} parent=1 // loop_body
      %s24 = ssub.s32 %s19, 1
      %s25 = ssub.s32 %s19, 2
      %s35 = sadd.s32 1, %s28
      %p36 = scmp.ge.s32.totalorder %s35, 1
      %s37 = scalar_select %p36, 0, %s35
      %s38 = sadd.s32 1, %s27
      %s39 = scalar_select %p36, %s38, %s27
      %p40 = scmp.ge.s32.totalorder %s39, 2
      %s41 = scalar_select %p40, 0, %s39
      %s42 = sadd.s32 1, %s26
      %s43 = scalar_select %p40, %s42, %s26
      %p44 = scmp.ge.s32.totalorder %s43, 1
      %s45 = scalar_select %p44, 0, %s43
      %s46 = sadd.s32 %s26, %s28
      %s47 = sld [smem:[#allocation3 + %s46]]
      %s48 = sadd.s32 %s45, %s37
      %s49 = sld [smem:[#allocation3 + %s48]]
      %s50 = ssub.s32 %s27, %s41
      %s51 = ssub.s32 %s47, %s49
      %s52 = sor.u32 %s50, %s51
      %p53 = scmp.eq.s32.totalorder %s52, 0
      %s55 = sadd.s32 %s54, 1
      %s56 = scalar_select %p53, %s54, %s55
      %p59 = pneg %p53
      %p60 = scmp.eq.s32.totalorder %s19, 1
      %p61 = por %p59, %p60
      %p62 = scmp.ne.s32.totalorder %s54, %s57
      %p63 = scmp.eq.s32.totalorder %s19, 0
      %p64 = por %p62, %p63
      %p65 = scmp.ne.s32.totalorder %s54, %s57
      %p66 = scmp.eq.s32.totalorder %s24, 1
      %p67 = por %p65, %p66
      %p68 = scmp.ne.s32.totalorder %s57, %s58
      %p69 = scmp.eq.s32.totalorder %s24, 0
      %p70 = por %p68, %p69
      %p71 = scmp.ne.s32.totalorder %s57, %s58
      %p72 = scmp.eq.s32.totalorder %s25, 1
      %p73 = por %p71, %p72
      %p75 = scmp.ne.s32.totalorder %s58, %s74
      %p76 = scmp.eq.s32.totalorder %s25, 0
      %p77 = por %p75, %p76
      %s78 = sadd.s32 %s26, %s28
      %s79 = sld [smem:[#allocation4 + %s78]]
      %s80 = sadd.s32 %s45, %s37
      %s81 = sld [smem:[#allocation4 + %s80]]
      %s82 = ssub.s32 %s27, %s41
      %s83 = ssub.s32 %s79, %s81
      %s84 = sor.u32 %s82, %s83
      %p85 = scmp.eq.s32.totalorder %s84, 0
      %s87 = sadd.s32 %s86, 1
      %s88 = scalar_select %p85, %s86, %s87
      %p91 = pneg %p85
      %p92 = scmp.eq.s32.totalorder %s19, 1
      %p93 = por %p91, %p92
      %p94 = scmp.ne.s32.totalorder %s86, %s89
      %p95 = scmp.eq.s32.totalorder %s19, 0
      %p96 = por %p94, %p95
      %p97 = scmp.ne.s32.totalorder %s86, %s89
      %p98 = scmp.eq.s32.totalorder %s24, 1
      %p99 = por %p97, %p98
      %p100 = scmp.ne.s32.totalorder %s89, %s90
      %p101 = scmp.eq.s32.totalorder %s24, 0
      %p102 = por %p100, %p101
      %p103 = scmp.ne.s32.totalorder %s89, %s90
      %p104 = scmp.eq.s32.totalorder %s25, 1
      %p105 = por %p103, %p104
      %p107 = scmp.ne.s32.totalorder %s90, %s106
      %p108 = scmp.eq.s32.totalorder %s25, 0
      %p109 = por %p107, %p108
      %s110 = sadd.s32 %s26, %s28
      %s111 = sld [smem:[#allocation3 + %s110]]
      %s112 = sadd.s32 %s45, %s37
      %s113 = sld [smem:[#allocation3 + %s112]]
      %s114 = ssub.s32 %s27, %s41
      %s115 = ssub.s32 %s111, %s113
      %s116 = sor.u32 %s114, %s115
      %p117 = scmp.eq.s32.totalorder %s116, 0
      %s119 = sadd.s32 %s118, 1
      %s120 = scalar_select %p117, %s118, %s119
      %p123 = pneg %p117
      %p124 = scmp.eq.s32.totalorder %s19, 1
      %p125 = por %p123, %p124
      %p126 = scmp.ne.s32.totalorder %s118, %s121
      %p127 = scmp.eq.s32.totalorder %s19, 0
      %p128 = por %p126, %p127
      %p129 = scmp.ne.s32.totalorder %s118, %s121
      %p130 = scmp.eq.s32.totalorder %s24, 1
      %p131 = por %p129, %p130
      %p132 = scmp.ne.s32.totalorder %s121, %s122
      %p133 = scmp.eq.s32.totalorder %s24, 0
      %p134 = por %p132, %p133
      %p135 = scmp.ne.s32.totalorder %s121, %s122
      %p136 = scmp.eq.s32.totalorder %s25, 1
      %p137 = por %p135, %p136
      %p139 = scmp.ne.s32.totalorder %s122, %s138
      %p140 = scmp.eq.s32.totalorder %s25, 0
      %p141 = por %p139, %p140
      %s142 = sadd.s32 %s26, %s28
      %s143 = sld [smem:[#allocation4 + %s142]]
      %s144 = sadd.s32 %s45, %s37
      %s145 = sld [smem:[#allocation4 + %s144]]
      %s146 = ssub.s32 %s27, %s41
      %s147 = ssub.s32 %s143, %s145
      %s148 = sor.u32 %s146, %s147
      %p149 = scmp.eq.s32.totalorder %s148, 0
      %s151 = sadd.s32 %s150, 1
      %s152 = scalar_select %p149, %s150, %s151
      %p155 = pneg %p149
      %p156 = scmp.eq.s32.totalorder %s19, 1
      %p157 = por %p155, %p156
      %p158 = scmp.ne.s32.totalorder %s150, %s153
      %p159 = scmp.eq.s32.totalorder %s19, 0
      %p160 = por %p158, %p159
      %p161 = scmp.ne.s32.totalorder %s150, %s153
      %p162 = scmp.eq.s32.totalorder %s24, 1
      %p163 = por %p161, %p162
      %p164 = scmp.ne.s32.totalorder %s153, %s154
      %p165 = scmp.eq.s32.totalorder %s24, 0
      %p166 = por %p164, %p165
      %p167 = scmp.ne.s32.totalorder %s153, %s154
      %p168 = scmp.eq.s32.totalorder %s25, 1
      %p169 = por %p167, %p168
      %p171 = scmp.ne.s32.totalorder %s154, %s170
      %p172 = scmp.eq.s32.totalorder %s25, 0
      %p173 = por %p171, %p172
      %s174 = ssub.s32 %s26, %s45
      %s175 = ssub.s32 %s27, %s41
      %s176 = sor.u32 %s174, %s175
      %p177 = scmp.eq.s32.totalorder %s176, 0
      %s179 = sadd.s32 %s178, 1
      %s180 = scalar_select %p177, %s178, %s179
      %p183 = pneg %p177
      %p184 = scmp.eq.s32.totalorder %s19, 1
      %p185 = por %p183, %p184
      %p186 = scmp.ne.s32.totalorder %s178, %s181
      %p187 = scmp.eq.s32.totalorder %s19, 0
      %p188 = por %p186, %p187
      %p189 = scmp.ne.s32.totalorder %s178, %s181
      %p190 = scmp.eq.s32.totalorder %s24, 1
      %p191 = por %p189, %p190
      %p192 = scmp.ne.s32.totalorder %s181, %s182
      %p193 = scmp.eq.s32.totalorder %s24, 0
      %p194 = por %p192, %p193
      %p195 = scmp.ne.s32.totalorder %s181, %s182
      %p196 = scmp.eq.s32.totalorder %s25, 1
      %p197 = por %p195, %p196
      %p199 = scmp.ne.s32.totalorder %s182, %s198
      %p200 = scmp.eq.s32.totalorder %s25, 0
      %p201 = por %p199, %p200
      %p202 = scmp.le.s32.totalorder 1, %s19
      %p203 = scmp.lt.s32.totalorder %s19, 3
      %p204 = pnand %p202, %p203
      %p205 = pneg %p204
      // Predicated region
      $region9: #{tpu_custom_call.1} parent=5 // pred_check
        _
      $region10: #{tpu_custom_call.1} parent=5 // pred_check_branch
        %207 = sbr.rel (%p204) target = $region12
      $region11: #{tpu_custom_call.1} parent=5 // pred_region
        %s208 = ssub.s32 %s19, 1
      $region12: #{tpu_custom_call.1} parent=5 // pred_fallthru
        _
      %p209 = scmp.lt.s32.totalorder %s19, 2
      // Predicated region
      $region13: #{tpu_custom_call.1} parent=5 // pred_check
        %p210 = pneg %p209
      $region14: #{tpu_custom_call.1} parent=5 // pred_check_branch
        %212 = sbr.rel (%p210) target = $region16
      $region15: #{tpu_custom_call.1} parent=5 // pred_region
        // Predicated region
        $region17: #{tpu_custom_call.1} parent=15 // pred_check
          %p213 = pneg %p64
        $region18: #{tpu_custom_call.1} parent=15 // pred_check_branch
          %215 = sbr.rel (%p213) target = $region20
        $region19: #{tpu_custom_call.1} parent=15 // pred_region
          %s216 = sadd.s32 %s26, %s28
          %s217 = sld [smem:[#allocation3 + %s216]]
          %p218 = scmp.lt.s32.totalorder %s27, 1
          %s219 = scalar_select %p218, %s27, 1
          %p220 = scmp.lt.s32.totalorder %s217, 0
          %s221 = scalar_select %p220, %s217, 0
          %s222 = sadd.s32 %s221, %s219
          %s223 = smul.addr %s222, 8
          %s224 = scalar_lea.vmem %s3, %s223
          %s225 = sadd.s32 %s26, %s28
          %s226 = sld [smem:[#allocation3 + %s225]]
        $region20: #{tpu_custom_call.1} parent=15 // pred_fallthru
          _
        // Predicated region
        $region21: #{tpu_custom_call.1} parent=15 // pred_check
          %p227 = pneg %p96
        $region22: #{tpu_custom_call.1} parent=15 // pred_check_branch
          %229 = sbr.rel (%p227) target = $region24
        $region23: #{tpu_custom_call.1} parent=15 // pred_region
          %s230 = sadd.s32 %s26, %s28
          %s231 = sld [smem:[#allocation4 + %s230]]
          %p232 = scmp.lt.s32.totalorder %s27, 1
          %s233 = scalar_select %p232, %s27, 1
          %p234 = scmp.lt.s32.totalorder %s231, 0
          %s235 = scalar_select %p234, %s231, 0
          %s236 = sadd.s32 %s235, %s233
          %s237 = smul.addr %s236, 8
          %s238 = scalar_lea.vmem %s4, %s237
          %s239 = sadd.s32 %s26, %s28
          %s240 = sld [smem:[#allocation4 + %s239]]
        $region24: #{tpu_custom_call.1} parent=15 // pred_fallthru
          _
        // Predicated region
        $region25: #{tpu_custom_call.1} parent=15 // pred_check
          %p241 = pneg %p128
        $region26: #{tpu_custom_call.1} parent=15 // pred_check_branch
          %243 = sbr.rel (%p241) target = $region28
        $region27: #{tpu_custom_call.1} parent=15 // pred_region
          %s244 = sadd.s32 %s26, %s28
          %s245 = sld [smem:[#allocation3 + %s244]]
          %p246 = scmp.lt.s32.totalorder %s27, 1
          %s247 = scalar_select %p246, %s27, 1
          %p248 = scmp.lt.s32.totalorder %s245, 0
          %s249 = scalar_select %p248, %s245, 0
          %s250 = sadd.s32 %s249, %s247
          %s251 = scalar_lea.vmem %s5, %s250
          %s252 = sadd.s32 %s26, %s28
          %s253 = sld [smem:[#allocation3 + %s252]]
        $region28: #{tpu_custom_call.1} parent=15 // pred_fallthru
          _
        // Predicated region
        $region29: #{tpu_custom_call.1} parent=15 // pred_check
          %p254 = pneg %p160
        $region30: #{tpu_custom_call.1} parent=15 // pred_check_branch
          %256 = sbr.rel (%p254) target = $region32
        $region31: #{tpu_custom_call.1} parent=15 // pred_region
          %s257 = sadd.s32 %s26, %s28
          %s258 = sld [smem:[#allocation4 + %s257]]
          %p259 = scmp.lt.s32.totalorder %s27, 1
          %s260 = scalar_select %p259, %s27, 1
          %p261 = scmp.lt.s32.totalorder %s258, 0
          %s262 = scalar_select %p261, %s258, 0
          %s263 = sadd.s32 %s262, %s260
          %s264 = scalar_lea.vmem %s6, %s263
          %s265 = sadd.s32 %s26, %s28
          %s266 = sld [smem:[#allocation4 + %s265]]
        $region32: #{tpu_custom_call.1} parent=15 // pred_fallthru
          _
      $region16: #{tpu_custom_call.1} parent=5 // pred_fallthru
        _
      %p267 = scmp.le.s32.totalorder 1, %s19
      %p268 = scmp.lt.s32.totalorder %s19, 3
      %p269 = pnand %p267, %p268
      %p270 = pneg %p269
      // Predicated region
      $region33: #{tpu_custom_call.1} parent=5 // pred_check
        _
      $region34: #{tpu_custom_call.1} parent=5 // pred_check_branch
        %272 = sbr.rel (%p269) target = $region36
      $region35: #{tpu_custom_call.1} parent=5 // pred_region
        %s273 = ssub.s32 %s19, 1
        %s274 = sadd.s32 %s29, %s31
        %s275 = sld [smem:[#allocation3 + %s274]]
        %p276 = scmp.lt.s32.totalorder %s30, 1
        %s277 = scalar_select %p276, %s30, 1
        %p278 = scmp.lt.s32.totalorder %s275, 0
        %s279 = scalar_select %p278, %s275, 0
        %s280 = sadd.s32 %s279, %s277
        %s281 = smul.addr %s280, 8
        %s282 = scalar_lea.vmem %s3, %s281
        %p283 = pneg %p70
        %p284 = pneg %p67
        %s285 = sadd.s32 %s29, %s31
        %s286 = sld [smem:[#allocation4 + %s285]]
        %p287 = scmp.lt.s32.totalorder %s30, 1
        %s288 = scalar_select %p287, %s30, 1
        %p289 = scmp.lt.s32.totalorder %s286, 0
        %s290 = scalar_select %p289, %s286, 0
        %s291 = sadd.s32 %s290, %s288
        %s292 = smul.addr %s291, 8
        %s293 = scalar_lea.vmem %s4, %s292
        %p294 = pneg %p102
        %p295 = pneg %p99
        %s296 = sadd.s32 %s29, %s31
        %s297 = sld [smem:[#allocation3 + %s296]]
        %p298 = scmp.lt.s32.totalorder %s30, 1
        %s299 = scalar_select %p298, %s30, 1
        %p300 = scmp.lt.s32.totalorder %s297, 0
        %s301 = scalar_select %p300, %s297, 0
        %s302 = sadd.s32 %s301, %s299
        %s303 = scalar_lea.vmem %s5, %s302
        %p304 = pneg %p134
        %p305 = pneg %p131
        %s306 = sadd.s32 %s29, %s31
        %s307 = sld [smem:[#allocation4 + %s306]]
        %p308 = scmp.lt.s32.totalorder %s30, 1
        %s309 = scalar_select %p308, %s30, 1
        %p310 = scmp.lt.s32.totalorder %s307, 0
        %s311 = scalar_select %p310, %s307, 0
        %s312 = sadd.s32 %s311, %s309
        %s313 = scalar_lea.vmem %s6, %s312
        %p314 = pneg %p166
        %p315 = pneg %p163
        %p316 = pneg %p194
        %p317 = pneg %p191
        %s318 = sand.u32 %s181, 1
        %s319 = scalar_lea.sflag [#allocation7], %s318
        %s320 = sand.u32 %s181, 1
        %s321 = smul.addr %s320, 8
        %s322 = scalar_lea.vmem [#allocation6], %s321
        %s323 = sadd.s32 %s29, %s31
        %s324 = sld [smem:[#allocation3 + %s323]]
        %p325 = scmp.lt.s32.totalorder %s30, 1
        %s326 = scalar_select %p325, %s30, 1
        %p327 = scmp.lt.s32.totalorder %s324, 0
        %s328 = scalar_select %p327, %s324, 0
        %s329 = sadd.s32 %s328, %s326
        %s330 = smul.addr %s329, 8
        %s331 = scalar_lea.vmem %s3, %s330
        %s332 = sadd.s32 %s29, %s31
        %s333 = sld [smem:[#allocation3 + %s332]]
        %s334 = sadd.s32 %s29, %s31
        %s335 = sld [smem:[#allocation4 + %s334]]
        %p336 = scmp.lt.s32.totalorder %s30, 1
        %s337 = scalar_select %p336, %s30, 1
        %p338 = scmp.lt.s32.totalorder %s335, 0
        %s339 = scalar_select %p338, %s335, 0
        %s340 = sadd.s32 %s339, %s337
        %s341 = smul.addr %s340, 8
        %s342 = scalar_lea.vmem %s4, %s341
        %s343 = sadd.s32 %s29, %s31
        %s344 = sld [smem:[#allocation4 + %s343]]
        %s345 = sadd.s32 %s29, %s31
        %s346 = sld [smem:[#allocation3 + %s345]]
        %p347 = scmp.lt.s32.totalorder %s30, 1
        %s348 = scalar_select %p347, %s30, 1
        %p349 = scmp.lt.s32.totalorder %s346, 0
        %s350 = scalar_select %p349, %s346, 0
        %s351 = sadd.s32 %s350, %s348
        %s352 = scalar_lea.vmem %s5, %s351
        %s353 = sadd.s32 %s29, %s31
        %s354 = sld [smem:[#allocation3 + %s353]]
        %s355 = sadd.s32 %s29, %s31
        %s356 = sld [smem:[#allocation4 + %s355]]
        %p357 = scmp.lt.s32.totalorder %s30, 1
        %s358 = scalar_select %p357, %s30, 1
        %p359 = scmp.lt.s32.totalorder %s356, 0
        %s360 = scalar_select %p359, %s356, 0
        %s361 = sadd.s32 %s360, %s358
        %s362 = scalar_lea.vmem %s6, %s361
        %s363 = sadd.s32 %s29, %s31
        %s364 = sld [smem:[#allocation4 + %s363]]
        %p366 = scmp.eq.s32.totalorder %s31, 0
        // Predicated region
        $region37: #{tpu_custom_call.1} parent=35 // pred_check
          %p367 = pneg %p366
        $region38: #{tpu_custom_call.1} parent=35 // pred_check_branch
          %369 = sbr.rel (%p367) target = $region40
        $region39: #{tpu_custom_call.1} parent=35 // pred_region
          %370 = vst [vmem:[%s322] sm:$0xff] 0.0
        $region40: #{tpu_custom_call.1} parent=35 // pred_fallthru
          _
        %s371 = sadd.s32 %s29, %s31
        %s372 = sld [smem:[#allocation5 + %s371]]
        %s373 = scvt.s32.f32 %s372
        %v374 = vld [vmem:[%s331] sm:$0x1f]
        %v375 = vld [vmem:[%s342] sm:$0x1f]
        %v376 = vld [vmem:[%s352] sm:$0x1]
        %v377 = vld [vmem:[%s362] sm:$0x1]
        %378 = vxpose.xlu0.b32.start [1/16] %v374, 128
        %379 = vxpose.xlu0.b32.cont [2/16] 0.0, 128
        %380 = vxpose.xlu0.b32.cont [3/16] 0.0, 128
        %381 = vxpose.xlu0.b32.cont [4/16] 0.0, 128
        %382 = vxpose.xlu0.b32.cont [5/16] 0.0, 128
        %383 = vxpose.xlu0.b32.cont [6/16] 0.0, 128
        %384 = vxpose.xlu0.b32.cont [7/16] 0.0, 128
        %385 = vxpose.xlu0.b32.cont [8/16] 0.0, 128
        %386 = vxpose.xlu0.b32.cont [9/16] 0.0, 128
        %387 = vxpose.xlu0.b32.cont [10/16] 0.0, 128
        %388 = vxpose.xlu0.b32.cont [11/16] 0.0, 128
        %389 = vxpose.xlu0.b32.cont [12/16] 0.0, 128
        %390 = vxpose.xlu0.b32.cont [13/16] 0.0, 128
        %391 = vxpose.xlu0.b32.cont [14/16] 0.0, 128
        %392 = vxpose.xlu0.b32.cont [15/16] 0.0, 128
        %393 = vxpose.xlu0.b32.end [16/16] 0.0, 128
        %v394 = vpop.trf.xlu0
        %v395 = vpop.trf.xlu0
        %v396 = vpop.trf.xlu0
        %v397 = vpop.trf.xlu0
        %v398 = vpop.trf.xlu0
        %v399 = vpop.trf.xlu0
        %v400 = vpop.trf.xlu0
        %v401 = vpop.trf.xlu0
        %v402 = vpop.trf.xlu0
        %v403 = vpop.trf.xlu0
        %v404 = vpop.trf.xlu0
        %v405 = vpop.trf.xlu0
        %v406 = vpop.trf.xlu0
        %v407 = vpop.trf.xlu0
        %v408 = vpop.trf.xlu0
        %v409 = vpop.trf.xlu0
        %vm410 = vcmask 39936
        %v412 = vsel %vm410, %v394, 0
        %v415 = vsel %vm410, %v395, 0
        %v418 = vsel %vm410, %v396, 0
        %v421 = vsel %vm410, %v397, 0
        %v424 = vsel %vm410, %v398, 0
        %v427 = vsel %vm410, %v399, 0
        %v430 = vsel %vm410, %v400, 0
        %v433 = vsel %vm410, %v401, 0
        %v436 = vsel %vm410, %v402, 0
        %v439 = vsel %vm410, %v403, 0
        %v442 = vsel %vm410, %v404, 0
        %v445 = vsel %vm410, %v405, 0
        %v448 = vsel %vm410, %v406, 0
        %v451 = vsel %vm410, %v407, 0
        %v454 = vsel %vm410, %v408, 0
        %v457 = vsel %vm410, %v409, 0
        %vm459 = vcmask 1044480
        %v461 = vsel %vm459, %v375, 0
        %463 = vmatprep.subr.mxu0 0.0
        %464 = vmatpush1.msra.mxu0 %v461
        %465 = vmatprep.subr.mxu0 0.0
        %466 = vmatpush1.msra.mxu0 0.0
        %467 = vmatprep.subr.mxu0 0.0
        %468 = vmatpush1.msra.mxu0 0.0
        %469 = vmatprep.subr.mxu0 0.0
        %470 = vmatpush1.msra.mxu0 0.0
        %471 = vmatprep.subr.mxu0 0.0
        %472 = vmatpush1.msra.mxu0 0.0
        %473 = vmatprep.subr.mxu0 0.0
        %474 = vmatpush1.msra.mxu0 0.0
        %475 = vmatprep.subr.mxu0 0.0
        %476 = vmatpush1.msra.mxu0 0.0
        %477 = vmatprep.subr.mxu0 0.0
        %478 = vmatpush1.msra.mxu0 0.0
        %479 = vmatprep.subr.mxu0 0.0
        %480 = vmatpush1.msra.mxu0 0.0
        %481 = vmatprep.subr.mxu0 0.0
        %482 = vmatpush1.msra.mxu0 0.0
        %483 = vmatprep.subr.mxu0 0.0
        %484 = vmatpush1.msra.mxu0 0.0
        %485 = vmatprep.subr.mxu0 0.0
        %486 = vmatpush1.msra.mxu0 0.0
        %487 = vmatprep.subr.mxu0 0.0
        %488 = vmatpush1.msra.mxu0 0.0
        %489 = vmatprep.subr.mxu0 0.0
        %490 = vmatpush1.msra.mxu0 0.0
        %491 = vmatprep.subr.mxu0 0.0
        %492 = vmatpush1.msra.mxu0 0.0
        %493 = vmatprep.subr.mxu0 0.0
        %494 = vmatpush1.msra.mxu0 0.0
        %495 = vmatprep.subr.mxu0 0.0
        %496 = vmatpush1.msra.mxu0 0.0
        %497 = vmatprep.subr.mxu0 0.0
        %498 = vmatpush1.msra.mxu0 0.0
        %499 = vmatprep.subr.mxu0 0.0
        %500 = vmatpush1.msra.mxu0 0.0
        %501 = vmatprep.subr.mxu0 0.0
        %502 = vmatpush1.msra.mxu0 0.0
        %503 = vmatprep.subr.mxu0 0.0
        %504 = vmatpush1.msra.mxu0 0.0
        %505 = vmatprep.subr.mxu0 0.0
        %506 = vmatpush1.msra.mxu0 0.0
        %507 = vmatprep.subr.mxu0 0.0
        %508 = vmatpush1.msra.mxu0 0.0
        %509 = vmatprep.subr.mxu0 0.0
        %510 = vmatpush1.msra.mxu0 0.0
        %511 = vmatprep.subr.mxu0 0.0
        %512 = vmatpush1.msra.mxu0 0.0
        %513 = vmatprep.subr.mxu0 0.0
        %514 = vmatpush1.msra.mxu0 0.0
        %515 = vmatprep.subr.mxu0 0.0
        %516 = vmatpush1.msra.mxu0 0.0
        %517 = vmatprep.subr.mxu0 0.0
        %518 = vmatpush1.msra.mxu0 0.0
        %519 = vmatprep.subr.mxu0 0.0
        %520 = vmatpush1.msra.mxu0 0.0
        %521 = vmatprep.subr.mxu0 0.0
        %522 = vmatpush1.msra.mxu0 0.0
        %523 = vmatprep.subr.mxu0 0.0
        %524 = vmatpush1.msra.mxu0 0.0
        %525 = vmatprep.subr.mxu0 0.0
        %526 = vmatpush1.msra.mxu0 0.0
        %527 = vmatprep.mubr.f32.mxu0 0.0
        %528 = vmatmul.mubr.f32.gmra.mrb[0].mxu0 %v412
        %v529 = vpop.f32.mrb[0].mxu0
        %v530 = vadd.f32 0.0, %v529
        %v531 = vpop.f32.mrb[0].mxu0
        %532 = vmatprep.mubr.f32.mxu0 0.0
        %533 = vmatmul.mubr.f32.gmra.mrb[0].mxu0 %v415
        %v534 = vpop.f32.mrb[0].mxu0
        %v535 = vadd.f32 0.0, %v534
        %v536 = vpop.f32.mrb[0].mxu0
        %537 = vmatprep.mubr.f32.mxu0 0.0
        %538 = vmatmul.mubr.f32.gmra.mrb[0].mxu0 %v418
        %v539 = vpop.f32.mrb[0].mxu0
        %v540 = vadd.f32 0.0, %v539
        %v541 = vpop.f32.mrb[0].mxu0
        %542 = vmatprep.mubr.f32.mxu0 0.0
        %543 = vmatmul.mubr.f32.gmra.mrb[0].mxu0 %v421
        %v544 = vpop.f32.mrb[0].mxu0
        %v545 = vadd.f32 0.0, %v544
        %v546 = vpop.f32.mrb[0].mxu0
        %547 = vmatprep.mubr.f32.mxu0 0.0
        %548 = vmatmul.mubr.f32.gmra.mrb[0].mxu0 %v424
        %v549 = vpop.f32.mrb[0].mxu0
        %v550 = vadd.f32 0.0, %v549
        %v551 = vpop.f32.mrb[0].mxu0
        %552 = vmatprep.mubr.f32.mxu0 0.0
        %553 = vmatmul.mubr.f32.gmra.mrb[0].mxu0 %v427
        %v554 = vpop.f32.mrb[0].mxu0
        %v555 = vadd.f32 0.0, %v554
        %v556 = vpop.f32.mrb[0].mxu0
        %557 = vmatprep.mubr.f32.mxu0 0.0
        %558 = vmatmul.mubr.f32.gmra.mrb[0].mxu0 %v430
        %v559 = vpop.f32.mrb[0].mxu0
        %v560 = vadd.f32 0.0, %v559
        %v561 = vpop.f32.mrb[0].mxu0
        %562 = vmatprep.mubr.f32.mxu0 0.0
        %563 = vmatmul.mubr.f32.gmra.mrb[0].mxu0 %v433
        %v564 = vpop.f32.mrb[0].mxu0
        %v565 = vadd.f32 0.0, %v564
        %v566 = vpop.f32.mrb[0].mxu0
        %567 = vmatprep.mubr.f32.mxu0 0.0
        %568 = vmatmul.mubr.f32.gmra.mrb[0].mxu0 %v436
        %v569 = vpop.f32.mrb[0].mxu0
        %v570 = vadd.f32 0.0, %v569
        %v571 = vpop.f32.mrb[0].mxu0
        %572 = vmatprep.mubr.f32.mxu0 0.0
        %573 = vmatmul.mubr.f32.gmra.mrb[0].mxu0 %v439
        %v574 = vpop.f32.mrb[0].mxu0
        %v575 = vadd.f32 0.0, %v574
        %v576 = vpop.f32.mrb[0].mxu0
        %577 = vmatprep.mubr.f32.mxu0 0.0
        %578 = vmatmul.mubr.f32.gmra.mrb[0].mxu0 %v442
        %v579 = vpop.f32.mrb[0].mxu0
        %v580 = vadd.f32 0.0, %v579
        %v581 = vpop.f32.mrb[0].mxu0
        %582 = vmatprep.mubr.f32.mxu0 0.0
        %583 = vmatmul.mubr.f32.gmra.mrb[0].mxu0 %v445
        %v584 = vpop.f32.mrb[0].mxu0
        %v585 = vadd.f32 0.0, %v584
        %v586 = vpop.f32.mrb[0].mxu0
        %587 = vmatprep.mubr.f32.mxu0 0.0
        %588 = vmatmul.mubr.f32.gmra.mrb[0].mxu0 %v448
        %v589 = vpop.f32.mrb[0].mxu0
        %v590 = vadd.f32 0.0, %v589
        %v591 = vpop.f32.mrb[0].mxu0
        %592 = vmatprep.mubr.f32.mxu0 0.0
        %593 = vmatmul.mubr.f32.gmra.mrb[0].mxu0 %v451
        %v594 = vpop.f32.mrb[0].mxu0
        %v595 = vadd.f32 0.0, %v594
        %v596 = vpop.f32.mrb[0].mxu0
        %597 = vmatprep.mubr.f32.mxu0 0.0
        %598 = vmatmul.mubr.f32.gmra.mrb[0].mxu0 %v454
        %v599 = vpop.f32.mrb[0].mxu0
        %v600 = vadd.f32 0.0, %v599
        %v601 = vpop.f32.mrb[0].mxu0
        %602 = vmatprep.mubr.f32.mxu0 0.0
        %603 = vmatmul.mubr.f32.gmra.mrb[0].mxu0 %v457
        %v604 = vpop.f32.mrb[0].mxu0
        %v605 = vadd.f32 0.0, %v604
        %v606 = vpop.f32.mrb[0].mxu0
        %607 = vdwg.mxu0
        %v608 = vpack.c.bf16 %v535, %v530
        %v609 = vpack.c.bf16 %v545, %v540
        %v610 = vpack.c.bf16 %v555, %v550
        %v611 = vpack.c.bf16 %v565, %v560
        %v612 = vpack.c.bf16 %v575, %v570
        %v613 = vpack.c.bf16 %v585, %v580
        %v614 = vpack.c.bf16 %v595, %v590
        %v615 = vpack.c.bf16 %v605, %v600
        %v617 = vmul.bf16 %v608, 1069105081
        %v618 = vpow.bf16.pop %v617
        %v620 = vmul.bf16 %v609, 1069105081
        %v621 = vpow.bf16.pop %v620
        %v623 = vmul.bf16 %v610, 1069105081
        %v624 = vpow.bf16.pop %v623
        %v626 = vmul.bf16 %v611, 1069105081
        %v627 = vpow.bf16.pop %v626
        %v629 = vmul.bf16 %v612, 1069105081
        %v630 = vpow.bf16.pop %v629
        %v632 = vmul.bf16 %v613, 1069105081
        %v633 = vpow.bf16.pop %v632
        %v635 = vmul.bf16 %v614, 1069105081
        %v636 = vpow.bf16.pop %v635
        %v638 = vmul.bf16 %v615, 1069105081
        %v639 = vpow.bf16.pop %v638
        %640 = vmatprep.subr.bf16.mxu0 0
        %641 = vmatpush1.bf16.msra.mxu0 %v618
        %642 = vmatprep.subr.bf16.mxu0 0
        %643 = vmatpush1.bf16.msra.mxu0 %v621
        %644 = vmatprep.subr.bf16.mxu0 0
        %645 = vmatpush1.bf16.msra.mxu0 %v624
        %646 = vmatprep.subr.bf16.mxu0 0
        %647 = vmatpush1.bf16.msra.mxu0 %v627
        %648 = vmatprep.subr.bf16.mxu0 0
        %649 = vmatpush1.bf16.msra.mxu0 %v630
        %650 = vmatprep.subr.bf16.mxu0 0
        %651 = vmatpush1.bf16.msra.mxu0 %v633
        %652 = vmatprep.subr.bf16.mxu0 0
        %653 = vmatpush1.bf16.msra.mxu0 %v636
        %654 = vmatprep.subr.bf16.mxu0 0
        %655 = vmatpush1.bf16.msra.mxu0 %v639
        %656 = vmatprep.subr.bf16.mxu0 0
        %657 = vmatpush1.bf16.msra.mxu0 0
        %658 = vmatprep.subr.bf16.mxu0 0
        %659 = vmatpush1.bf16.msra.mxu0 0
        %660 = vmatprep.subr.bf16.mxu0 0
        %661 = vmatpush1.bf16.msra.mxu0 0
        %662 = vmatprep.subr.bf16.mxu0 0
        %663 = vmatpush1.bf16.msra.mxu0 0
        %664 = vmatprep.subr.bf16.mxu0 0
        %665 = vmatpush1.bf16.msra.mxu0 0
        %666 = vmatprep.subr.bf16.mxu0 0
        %667 = vmatpush1.bf16.msra.mxu0 0
        %668 = vmatprep.subr.bf16.mxu0 0
        %669 = vmatpush1.bf16.msra.mxu0 0
        %670 = vmatprep.subr.bf16.mxu0 0
        %671 = vmatpush1.bf16.msra.mxu0 0
        %672 = vmatprep.mubr.bf16.mxu0 0
        %673 = vmatmul.mubr.bf16.gmra.mrb[0].mxu0 %v376
        %v674 = vpop.f32.mrb[0].mxu0
        %v675 = vadd.f32 0.0, %v674
        %v676 = vpop.f32.mrb[0].mxu0
        %v677 = vpop.f32.mrb[0].mxu0
        %v678 = vpop.f32.mrb[0].mxu0
        %679 = vdwg.mxu0
        %v680 = vunpack.c.l.bf16 %v377
        %v681 = vmul.f32 %v675, %v680
        %vm682 = vcmask 1041408
        %v683 = vsel %vm682, %v681, 0.0
        %684 = vadd.xlane.f32.xlu0 %v683
        %v685 = vpop.xlane.xlu0 %684
        %v686 = vrot.slane %v685, 4
        %v687 = vadd.f32 %v685, %v686
        %v688 = vrot.slane %v687, 2
        %v689 = vadd.f32 %v687, %v688
        %v690 = vrot.slane %v689, 1
        %v691 = vadd.f32 %v689, %v690
        %s692 = vtos %v691
        %s693 = sadd.f32 %s692, 0.0
        %v694 = vld [vmem:[%s322] sm:$0xff]
        %s695 = smul.f32 %s373, %s693
        %v696 = vstv %s695
        %v697 = vadd.f32 %v694, %v696
        %698 = vst [vmem:[%s322] sm:$0xff] %v697
        %s699 = sand.u32 %s181, 1
        %s700 = scalar_lea.sflag [#allocation7], %s699
        %s701 = sand.u32 %s181, 1
        %s702 = smul.addr %s701, 8
        %s703 = scalar_lea.vmem [#allocation6], %s702
        // Predicated region
        $region41: #{tpu_custom_call.1} parent=35 // pred_check
          %p704 = pneg %p191
        $region42: #{tpu_custom_call.1} parent=35 // pred_check_branch
          %706 = sbr.rel (%p704) target = $region44
        $region43: #{tpu_custom_call.1} parent=35 // pred_region
          %s708 = ssub.s32 128, 128
          %709 = vsyncadd %s700, %s708
          %s710 = smul.addr %s29, 2
          %s711 = sadd.s32 %s30, %s710
          %s712 = smul.addr %s711, 128
          %s713 = scalar_lea.hbm %s7, %s712
          %s715 = sshll.u32 %s703, 4
          %s716 = int_to_ptr.vmem [resolvable:$true] %s715
          %718 = dma.vmem_to_hbm [thread:$0]  %s716, 128, %s713, %s700
        $region44: #{tpu_custom_call.1} parent=35 // pred_fallthru
          _
      $region36: #{tpu_custom_call.1} parent=5 // pred_fallthru
        _
      %p719 = scmp.le.s32.totalorder 2, %s19
      // Predicated region
      $region45: #{tpu_custom_call.1} parent=5 // pred_check
        %p720 = pneg %p719
      $region46: #{tpu_custom_call.1} parent=5 // pred_check_branch
        %722 = sbr.rel (%p720) target = $region48
      $region47: #{tpu_custom_call.1} parent=5 // pred_region
        %s723 = ssub.s32 %s19, 2
        // Predicated region
        $region49: #{tpu_custom_call.1} parent=47 // pred_check
          %p724 = pneg %p197
        $region50: #{tpu_custom_call.1} parent=47 // pred_check_branch
          %726 = sbr.rel (%p724) target = $region52
        $region51: #{tpu_custom_call.1} parent=47 // pred_region
          %s727 = sand.u32 %s182, 1
          %s728 = scalar_lea.sflag [#allocation7], %s727
          %s729 = sand.u32 %s182, 1
          %s730 = smul.addr %s729, 8
          %s731 = scalar_lea.vmem [#allocation6], %s730
          %732 = dma.done %s728, 128
        $region52: #{tpu_custom_call.1} parent=47 // pred_fallthru
          _
      $region48: #{tpu_custom_call.1} parent=5 // pred_fallthru
        _
    $region6: #{tpu_custom_call.1} parent=1 // loop_footer
      %s23 = sadd.s32 1, %s19
    $region7: #{tpu_custom_call.1} parent=1 // loop_footer_branch
      %18 = sbr.rel target = $region3
    $region8: #{tpu_custom_call.1} parent=1 // loop_exit
      _
    %733 = vsyncpa [#allocation7], 1
    %s734 = scalar_lea.sflag [#allocation7], 1
    %735 = vsyncpa %s734, 1

</llo_original>
